<compile_context>
chip_gen: v7x
topology: tpu7x:2x2x1
jax: 0.10.0
libtpu: 0.0.40
codegen_flags: <defaults>
</compile_context>

<pallas_src>
import functools

import jax
import jax.numpy as jnp
from jax import lax
from jax.experimental import pallas as pl
from jax.experimental.pallas import tpu as pltpu


def _wce_kernel(logits_ref, labels_ref, sum_ref, cnt_ref, sum_acc, cnt_acc,
                *, ignore_index, hw, tp, last_tile_ragged):
    j = pl.program_id(1)
    last_j = pl.num_programs(1) - 1

    @pl.when(j == 0)
    def _():
        sum_acc[...] = jnp.zeros_like(sum_acc)
        cnt_acc[...] = jnp.zeros_like(cnt_acc)

    x = logits_ref[...].astype(jnp.float32)    # (bt, C, tp): classes x pixels
    lab = labels_ref[...]                      # (bt, 1, tp) int32

    # Numerically stable log-sum-exp over the class (sublane) axis.
    m = jnp.max(x, axis=1, keepdims=True)                               # (bt, 1, tp)
    lse = m + jnp.log(jnp.sum(jnp.exp(x - m), axis=1, keepdims=True))   # (bt, 1, tp)

    # Target-class logit via a per-lane select over classes (no cast, no mul).
    cls = lax.broadcasted_iota(jnp.int32, x.shape, 1)                   # (bt, C, tp)
    picked = jnp.sum(jnp.where(cls == lab, x, 0.0), axis=1, keepdims=True)

    valid = lab != ignore_index                                         # (bt, 1, tp)
    # `where` (lane select), never multiply: garbage/NaN lanes of a ragged tile
    # must be cleanly replaced by zero.
    contrib = jnp.where(valid, lse - picked, 0.0)
    valid_f = valid.astype(jnp.float32)   # f32 count; exact up to 2**24 per lane

    if not last_tile_ragged:
        # HW % tp == 0: no range mask anywhere.
        sum_acc[...] += contrib
        cnt_acc[...] += valid_f
    else:
        # Range mask (iota + compare) only on the single ragged last tile.
        @pl.when(j != last_j)
        def _():
            sum_acc[...] += contrib
            cnt_acc[...] += valid_f

        @pl.when(j == last_j)
        def _():
            pix = j * tp + lax.broadcasted_iota(jnp.int32, (1, 1, tp), 2)
            in_range = pix < hw
            sum_acc[...] += jnp.where(in_range, contrib, 0.0)
            cnt_acc[...] += jnp.where(in_range, valid_f, 0.0)

    # One cross-lane reduce + tiny store per batch block, on its last tile.
    @pl.when(j == last_j)
    def _():
        sum_ref[...] = jnp.sum(sum_acc[...], axis=2, keepdims=True)
        cnt_ref[...] = jnp.sum(cnt_acc[...], axis=2, keepdims=True)


def weighted_cross_entropy_loss(logits, labels, *, ignore_index=-1,
                                reduction="mean",
                                vmem_budget_bytes=8 * 1024 * 1024):
    """logits: (B, C, H, W) float32/bfloat16; labels: (B, H, W) or (B, 1, H, W) int."""
    if labels.ndim == 4 and labels.shape[1] == 1:
        labels = jnp.squeeze(labels, axis=1)          # mimics labels.squeeze(1)

    B, C, H, W = logits.shape
    HW = H * W
    itemsize = jnp.dtype(logits.dtype).itemsize       # bf16 stays bf16 into the kernel

    # Free reshapes of NCHW -- no transpose, no extra HBM pass.
    logits3d = logits.reshape(B, C, HW)
    labels3d = labels.reshape(B, 1, HW).astype(jnp.int32)

    # --- Tile sizing from a VMEM budget -------------------------------------
    # Per pixel per batch row: double-buffered logits (2*C*itemsize),
    # double-buffered labels (2*4) and the two f32 accumulators (2*4).
    per_pixel = 2 * C * itemsize + 2 * 4 + 2 * 4
    tp_budget = max(128, vmem_budget_bytes // per_pixel)
    if HW <= tp_budget:
        tp = HW                                       # whole row; full-dim block
    else:
        tp = (tp_budget // 128) * 128                 # lane-aligned partial tile
    nj = pl.cdiv(HW, tp)
    last_tile_ragged = (HW % tp) != 0

    # --- Batch blocking: widen the block over batch when a row is still small.
    per_row_bytes = tp * per_pixel
    bt = 1
    for d in range(1, B + 1):
        if B % d == 0 and d * per_row_bytes <= vmem_budget_bytes:
            bt = d

    kernel = functools.partial(_wce_kernel, ignore_index=ignore_index,
                               hw=HW, tp=tp, last_tile_ragged=last_tile_ragged)

    cost = pl.CostEstimate(
        flops=5 * B * C * HW,
        transcendentals=B * (C + 1) * HW,
        bytes_accessed=B * HW * (C * itemsize + 4) + 8 * B,
    )

    loss_sum, valid_cnt = pl.pallas_call(
        kernel,
        out_shape=(
            jax.ShapeDtypeStruct((B, 1, 1), jnp.float32),
            jax.ShapeDtypeStruct((B, 1, 1), jnp.float32),
        ),
        grid_spec=pltpu.PrefetchScalarGridSpec(
            num_scalar_prefetch=0,
            grid=(B // bt, nj),
            in_specs=[
                pl.BlockSpec((bt, C, tp), lambda b, j: (b, 0, j)),
                pl.BlockSpec((bt, 1, tp), lambda b, j: (b, 0, j)),
            ],
            out_specs=[
                pl.BlockSpec((bt, 1, 1), lambda b, j: (b, 0, 0)),
                pl.BlockSpec((bt, 1, 1), lambda b, j: (b, 0, 0)),
            ],
            scratch_shapes=[
                pltpu.VMEM((bt, 1, tp), jnp.float32),   # per-lane loss partials
                pltpu.VMEM((bt, 1, tp), jnp.float32),   # per-lane valid counts
            ],
        ),
        compiler_params=pltpu.CompilerParams(
            # batch axis independent -> megacore / v7x 2-TC split;
            # pixel axis carries the accumulator -> serial.
            dimension_semantics=("parallel", "arbitrary")),
        cost_estimate=cost,
    )(logits3d, labels3d)

    total_sum = jnp.sum(loss_sum)
    total_cnt = jnp.sum(valid_cnt)
    if reduction == "mean":
        return total_sum / total_cnt       # NaN if all pixels ignored (matches PyTorch)
    if reduction == "sum":
        return total_sum
    raise ValueError(f"unsupported reduction: {reduction}")


def _ref_loss(logits, labels, ignore_index=-1):
    B, C, H, W = logits.shape
    x = jnp.transpose(logits, (0, 2, 3, 1)).reshape(-1, C).astype(jnp.float32)
    y = labels.reshape(-1)
    lse = jax.scipy.special.logsumexp(x, axis=-1)
    picked = jnp.take_along_axis(x, jnp.clip(y, 0, C - 1)[:, None], axis=-1)[:, 0]
    valid = (y != ignore_index)
    return jnp.sum(jnp.where(valid, lse - picked, 0.0)) / jnp.sum(valid)


if __name__ == "__main__":
    key = jax.random.PRNGKey(0)

    # 1) Spec-sized case: B=2, C=4, 16x16 f32.  tp = HW = 256, bt = 2 -> one grid step.
    B, C, H, W = 2, 4, 16, 16
    k1, k2, k3 = jax.random.split(key, 3)
    logits = jax.random.normal(k1, (B, C, H, W), dtype=jnp.float32)
    labels = jax.random.randint(k2, (B, H, W), 0, C, dtype=jnp.int32)
    labels = jnp.where(jax.random.bernoulli(k3, 0.1, (B, H, W)), -1, labels)

    loss = jax.block_until_ready(
        weighted_cross_entropy_loss(logits, labels, ignore_index=-1, reduction="mean"))
    ref = _ref_loss(logits, labels, -1)
    assert jnp.allclose(loss, ref, rtol=1e-5, atol=1e-5), (loss, ref)

    # 2) Ragged pixel tiles + serial accumulation: tiny forced budget so tp=128,
    #    HW=400 -> 4 tiles, last one masked in-kernel (no wrapper padding).
    B2, C2, H2, W2 = 2, 5, 20, 20
    k4, k5, k6 = jax.random.split(jax.random.PRNGKey(1), 3)
    logits2 = jax.random.normal(k4, (B2, C2, H2, W2), dtype=jnp.float32)
    labels2 = jax.random.randint(k5, (B2, H2, W2), 0, C2, dtype=jnp.int32)
    labels2 = jnp.where(jax.random.bernoulli(k6, 0.15, (B2, H2, W2)), -1, labels2)

    loss2 = jax.block_until_ready(
        weighted_cross_entropy_loss(logits2, labels2, ignore_index=-1,
                                    reduction="mean", vmem_budget_bytes=8192))
    ref2 = _ref_loss(logits2, labels2, -1)
    assert jnp.allclose(loss2, ref2, rtol=1e-5, atol=1e-5), (loss2, ref2)

    # 3) bf16 logits passed straight through (halves HBM traffic; math stays f32).
    logits_bf16 = logits.astype(jnp.bfloat16)
    loss3 = jax.block_until_ready(
        weighted_cross_entropy_loss(logits_bf16, labels, ignore_index=-1,
                                    reduction="mean"))
    ref3 = _ref_loss(logits_bf16.astype(jnp.float32), labels, -1)
    assert jnp.allclose(loss3, ref3, rtol=1e-5, atol=1e-5), (loss3, ref3)

    print("KERNEL_OK")
</pallas_src>

<mosaic_0001>
module attributes {stable_mosaic.version = 11 : i64} {
  func.func @_wce_kernel(%arg0: i32, %arg1: i32, %arg2: memref<2x4x256xf32, #tpu.memory_space<vmem>>, %arg3: memref<2x1x256xi32, #tpu.memory_space<vmem>>, %arg4: memref<2x1x1xf32, #tpu.memory_space<vmem>>, %arg5: memref<2x1x1xf32, #tpu.memory_space<vmem>>, %arg6: memref<2x1x256xf32, #tpu.memory_space<vmem>>, %arg7: memref<2x1x256xf32, #tpu.memory_space<vmem>>) attributes {dimension_semantics = [#tpu.dimension_semantics<parallel>, #tpu.dimension_semantics<arbitrary>], iteration_bounds = array<i64: 1, 1>, scalar_prefetch = 0 : i64, scratch_operands = 2 : i64, tpu.core_type = #tpu.core_type<tc>, window_params = [{transform_indices = @transform_0, window_bounds = array<i64: 2, 4, 256>}, {transform_indices = @transform_1, window_bounds = array<i64: 2, 1, 256>}, {transform_indices = @transform_2, window_bounds = array<i64: 2, 1, 1>}, {transform_indices = @transform_3, window_bounds = array<i64: 2, 1, 1>}]} {
    %c0_i32 = arith.constant 0 : i32
    %0 = arith.cmpi eq, %arg1, %c0_i32 : i32
    %1 = arith.extui %0 : i1 to i32
    %c0_i32_0 = arith.constant 0 : i32
    %2 = arith.cmpi ne, %1, %c0_i32_0 : i32
    scf.if %2 {
      %cst_24 = arith.constant 0.000000e+00 : f32
      %37 = vector.broadcast %cst_24 : f32 to vector<2x1x256xf32>
      %c0_25 = arith.constant 0 : index
      %c0_26 = arith.constant 0 : index
      %c0_27 = arith.constant 0 : index
      %38 = vector.load %arg6[%c0_25, %c0_26, %c0_27] : memref<2x1x256xf32, #tpu.memory_space<vmem>>, vector<2x1x256xf32>
      tpu.vector_store %arg6[%c0_25, %c0_26, %c0_27], %37 {strides = array<i32>} : memref<2x1x256xf32, #tpu.memory_space<vmem>>, vector<2x1x256xf32>,
      %cst_28 = arith.constant 0.000000e+00 : f32
      %39 = vector.broadcast %cst_28 : f32 to vector<2x1x256xf32>
      %c0_29 = arith.constant 0 : index
      %c0_30 = arith.constant 0 : index
      %c0_31 = arith.constant 0 : index
      %40 = vector.load %arg7[%c0_29, %c0_30, %c0_31] : memref<2x1x256xf32, #tpu.memory_space<vmem>>, vector<2x1x256xf32>
      tpu.vector_store %arg7[%c0_29, %c0_30, %c0_31], %39 {strides = array<i32>} : memref<2x1x256xf32, #tpu.memory_space<vmem>>, vector<2x1x256xf32>,
    } else {
    }
    %c0 = arith.constant 0 : index
    %c0_1 = arith.constant 0 : index
    %c0_2 = arith.constant 0 : index
    %3 = vector.load %arg2[%c0, %c0_1, %c0_2] : memref<2x4x256xf32, #tpu.memory_space<vmem>>, vector<2x4x256xf32>
    %c0_3 = arith.constant 0 : index
    %c0_4 = arith.constant 0 : index
    %c0_5 = arith.constant 0 : index
    %4 = vector.load %arg3[%c0_3, %c0_4, %c0_5] : memref<2x1x256xi32, #tpu.memory_space<vmem>>, vector<2x1x256xi32>
    %cst = arith.constant dense<0xFF800000> : vector<2x256xf32>
    %5 = vector.multi_reduction <maximumf>, %3, %cst [1] : vector<2x4x256xf32> to vector<2x256xf32>
    %6 = vector.shape_cast %5 : vector<2x256xf32> to vector<2x1x256xf32>
    %7 = vector.broadcast %6 : vector<2x1x256xf32> to vector<2x4x256xf32>
    %8 = arith.subf %3, %7 : vector<2x4x256xf32>
    %9 = math.exp %8 : vector<2x4x256xf32>
    %cst_6 = arith.constant dense<0.000000e+00> : vector<2x256xf32>
    %10 = vector.multi_reduction <add>, %9, %cst_6 [1] : vector<2x4x256xf32> to vector<2x256xf32>
    %11 = vector.shape_cast %10 : vector<2x256xf32> to vector<2x1x256xf32>
    %12 = math.log %11 : vector<2x1x256xf32>
    %13 = arith.addf %6, %12 : vector<2x1x256xf32>
    %14 = tpu.iota {dimensions = array<i32: 1>} : vector<2x4x256xi32>
    %15 = vector.broadcast %4 : vector<2x1x256xi32> to vector<2x4x256xi32>
    %16 = arith.cmpi eq, %14, %15 : vector<2x4x256xi32>
    %cst_7 = arith.constant 0.000000e+00 : f32
    %17 = vector.broadcast %cst_7 : f32 to vector<2x4x256xf32>
    %18 = arith.select %16, %3, %17 : vector<2x4x256xi1>, vector<2x4x256xf32>
    %cst_8 = arith.constant dense<0.000000e+00> : vector<2x256xf32>
    %19 = vector.multi_reduction <add>, %18, %cst_8 [1] : vector<2x4x256xf32> to vector<2x256xf32>
    %20 = vector.shape_cast %19 : vector<2x256xf32> to vector<2x1x256xf32>
    %c-1_i32 = arith.constant -1 : i32
    %21 = vector.broadcast %c-1_i32 : i32 to vector<2x1x256xi32>
    %22 = arith.cmpi ne, %4, %21 : vector<2x1x256xi32>
    %23 = arith.subf %13, %20 : vector<2x1x256xf32>
    %cst_9 = arith.constant 0.000000e+00 : f32
    %24 = vector.broadcast %cst_9 : f32 to vector<2x1x256xf32>
    %25 = arith.select %22, %23, %24 : vector<2x1x256xi1>, vector<2x1x256xf32>
    %26 = arith.extui %22 : vector<2x1x256xi1> to vector<2x1x256xi32>
    %27 = arith.sitofp %26 : vector<2x1x256xi32> to vector<2x1x256xf32>
    %c0_10 = arith.constant 0 : index
    %c0_11 = arith.constant 0 : index
    %c0_12 = arith.constant 0 : index
    %28 = vector.load %arg6[%c0_10, %c0_11, %c0_12] : memref<2x1x256xf32, #tpu.memory_space<vmem>>, vector<2x1x256xf32>
    %29 = arith.addf %28, %25 : vector<2x1x256xf32>
    %c0_13 = arith.constant 0 : index
    %c0_14 = arith.constant 0 : index
    %c0_15 = arith.constant 0 : index
    %30 = vector.load %arg6[%c0_13, %c0_14, %c0_15] : memref<2x1x256xf32, #tpu.memory_space<vmem>>, vector<2x1x256xf32>
    tpu.vector_store %arg6[%c0_13, %c0_14, %c0_15], %29 {strides = array<i32>} : memref<2x1x256xf32, #tpu.memory_space<vmem>>, vector<2x1x256xf32>,
    %c0_16 = arith.constant 0 : index
    %c0_17 = arith.constant 0 : index
    %c0_18 = arith.constant 0 : index
    %31 = vector.load %arg7[%c0_16, %c0_17, %c0_18] : memref<2x1x256xf32, #tpu.memory_space<vmem>>, vector<2x1x256xf32>
    %32 = arith.addf %31, %27 : vector<2x1x256xf32>
    %c0_19 = arith.constant 0 : index
    %c0_20 = arith.constant 0 : index
    %c0_21 = arith.constant 0 : index
    %33 = vector.load %arg7[%c0_19, %c0_20, %c0_21] : memref<2x1x256xf32, #tpu.memory_space<vmem>>, vector<2x1x256xf32>
    tpu.vector_store %arg7[%c0_19, %c0_20, %c0_21], %32 {strides = array<i32>} : memref<2x1x256xf32, #tpu.memory_space<vmem>>, vector<2x1x256xf32>,
    %c0_i32_22 = arith.constant 0 : i32
    %34 = arith.cmpi eq, %arg1, %c0_i32_22 : i32
    %35 = arith.extui %34 : i1 to i32
    %c0_i32_23 = arith.constant 0 : i32
    %36 = arith.cmpi ne, %35, %c0_i32_23 : i32
    scf.if %36 {
      %c0_24 = arith.constant 0 : index
      %c0_25 = arith.constant 0 : index
      %c0_26 = arith.constant 0 : index
      %37 = vector.load %arg6[%c0_24, %c0_25, %c0_26] : memref<2x1x256xf32, #tpu.memory_space<vmem>>, vector<2x1x256xf32>
      %cst_27 = arith.constant dense<0.000000e+00> : vector<2x1xf32>
      %38 = vector.multi_reduction <add>, %37, %cst_27 [2] : vector<2x1x256xf32> to vector<2x1xf32>
      %39 = vector.shape_cast %38 : vector<2x1xf32> to vector<2x1x1xf32>
      %c0_28 = arith.constant 0 : index
      %c0_29 = arith.constant 0 : index
      %c0_30 = arith.constant 0 : index
      %40 = vector.load %arg4[%c0_28, %c0_29, %c0_30] : memref<2x1x1xf32, #tpu.memory_space<vmem>>, vector<2x1x1xf32>
      tpu.vector_store %arg4[%c0_28, %c0_29, %c0_30], %39 {strides = array<i32>} : memref<2x1x1xf32, #tpu.memory_space<vmem>>, vector<2x1x1xf32>,
      %c0_31 = arith.constant 0 : index
      %c0_32 = arith.constant 0 : index
      %c0_33 = arith.constant 0 : index
      %41 = vector.load %arg7[%c0_31, %c0_32, %c0_33] : memref<2x1x256xf32, #tpu.memory_space<vmem>>, vector<2x1x256xf32>
      %cst_34 = arith.constant dense<0.000000e+00> : vector<2x1xf32>
      %42 = vector.multi_reduction <add>, %41, %cst_34 [2] : vector<2x1x256xf32> to vector<2x1xf32>
      %43 = vector.shape_cast %42 : vector<2x1xf32> to vector<2x1x1xf32>
      %c0_35 = arith.constant 0 : index
      %c0_36 = arith.constant 0 : index
      %c0_37 = arith.constant 0 : index
      %44 = vector.load %arg5[%c0_35, %c0_36, %c0_37] : memref<2x1x1xf32, #tpu.memory_space<vmem>>, vector<2x1x1xf32>
      tpu.vector_store %arg5[%c0_35, %c0_36, %c0_37], %43 {strides = array<i32>} : memref<2x1x1xf32, #tpu.memory_space<vmem>>, vector<2x1x1xf32>,
    } else {
    }
    return
  }
  func.func @transform_0(%arg0: i32, %arg1: i32) -> (i32, i32, i32) {
    %c0_i32 = arith.constant 0 : i32
    %c0_i32_0 = arith.constant 0 : i32
    return %arg0, %c0_i32, %arg1 : i32, i32, i32
  }
  func.func @transform_1(%arg0: i32, %arg1: i32) -> (i32, i32, i32) {
    %c0_i32 = arith.constant 0 : i32
    %c0_i32_0 = arith.constant 0 : i32
    return %arg0, %c0_i32, %arg1 : i32, i32, i32
  }
  func.func @transform_2(%arg0: i32, %arg1: i32) -> (i32, i32, i32) {
    %c0_i32 = arith.constant 0 : i32
    %c0_i32_0 = arith.constant 0 : i32
    %c0_i32_1 = arith.constant 0 : i32
    return %arg0, %c0_i32, %c0_i32_0 : i32, i32, i32
  }
  func.func @transform_3(%arg0: i32, %arg1: i32) -> (i32, i32, i32) {
    %c0_i32 = arith.constant 0 : i32
    %c0_i32_0 = arith.constant 0 : i32
    %c0_i32_1 = arith.constant 0 : i32
    return %arg0, %c0_i32, %c0_i32_0 : i32, i32, i32
  }
}

</mosaic_0001>

<llo_original>
// kernel: tpu_custom_call.1
$region0: #{tpu_custom_call.1}
  #allocation0 [shape = 'u32[]', space=smem, size = 0x4, offset = 0x4, fixed_abs, tag = 'smem constant byte address 0x4 - core index']
  #allocation1 [shape = 'u32[144,128]{1,0:T(1,128)}', space=vmem, size = 0x12000, scoped, tag = 'internal scratch']
  #allocation2 [shape = 'f32[2,1,256]{2,1,0:T(1,128)}', space=vmem, size = 0x800, scoped, tag = 'scratch operand']
  #allocation3 [shape = 'f32[2,1,256]{2,1,0:T(1,128)}', space=vmem, size = 0x800, scoped, tag = 'scratch operand']
  %s0 = inlined_call_operand.hbm [shape: f32[2,4,256], index: 0, kind: input, shape index: {}]
  %s1 = inlined_call_operand.hbm [shape: s32[2,1,256], index: 1, kind: input, shape index: {}]
  %s2 = inlined_call_operand.vmem [shape: f32[2,1,1], index: 2, kind: output, shape index: {0}]
  %s3 = inlined_call_operand.vmem [shape: f32[2,1,1], index: 3, kind: output, shape index: {1}]
  %4 = xla_tuple %s2, %s3
  %s5 = sld [smem:[#allocation0]]
  $region42: #{tpu_custom_call.1} parent=0
    _
  %s7 = ssub.s32 1, %s5
  %s8 = scalar_select 0, %s7, %s5
  $region1: #{tpu_custom_call.1} parent=0
    #allocation4 [shape = 'u8[8192]{0}', space=vmem, size = 0x2000, scoped, tag = 'input window, operand 0, single buffered']
    #allocation5 [shape = 's32[1]{0}', space=sflag, size = 0x4, scoped, tag = 'scoped memory for tpu_custom_call.1']
    #allocation6 [shape = 'u8[2048]{0}', space=vmem, size = 0x800, scoped, tag = 'input window, operand 1, single buffered']
    #allocation7 [shape = 's32[1]{0}', space=sflag, size = 0x4, scoped, tag = 'scoped memory for tpu_custom_call.1']
    %9 = vsyncpa [#allocation5], 0
    %10 = vsyncpa [#allocation7], 0
    // Predicated region
    $region2: #{tpu_custom_call.1} parent=1 // pred_check
      _
    $region3: #{tpu_custom_call.1} parent=1 // pred_check_branch
      %12 = sbr.rel (0) target = $region5
    $region4: #{tpu_custom_call.1} parent=1 // pred_region
      %s14 = ssub.s32 256, 256
      %15 = vsyncadd [#allocation5], %s14
      %s16 = sshll.u32 [#allocation4], 4
      %s17 = int_to_ptr.vmem [resolvable:$true] %s16
      %22 = dma.hbm_to_vmem [thread:$0]  %s0, 256, %s17, [#allocation5], 128, 128, 8
    $region5: #{tpu_custom_call.1} parent=1 // pred_fallthru
      _
    // Predicated region
    $region6: #{tpu_custom_call.1} parent=1 // pred_check
      _
    $region7: #{tpu_custom_call.1} parent=1 // pred_check_branch
      %24 = sbr.rel (0) target = $region9
    $region8: #{tpu_custom_call.1} parent=1 // pred_region
      %s26 = ssub.s32 64, 64
      %27 = vsyncadd [#allocation7], %s26
      %s28 = sshll.u32 [#allocation6], 4
      %s29 = int_to_ptr.vmem [resolvable:$true] %s28
      %34 = dma.hbm_to_vmem [thread:$0]  %s1, 64, %s29, [#allocation7], 32, 32, 2
    $region9: #{tpu_custom_call.1} parent=1 // pred_fallthru
      _
    // Predicated region
    $region10: #{tpu_custom_call.1} parent=1 // pred_check
      _
    $region11: #{tpu_custom_call.1} parent=1 // pred_check_branch
      %36 = sbr.rel (0) target = $region13
    $region12: #{tpu_custom_call.1} parent=1 // pred_region
      %37 = dma.done [#allocation5], 256
    $region13: #{tpu_custom_call.1} parent=1 // pred_fallthru
      _
    // Predicated region
    $region14: #{tpu_custom_call.1} parent=1 // pred_check
      _
    $region15: #{tpu_custom_call.1} parent=1 // pred_check_branch
      %39 = sbr.rel (0) target = $region17
    $region16: #{tpu_custom_call.1} parent=1 // pred_region
      %40 = dma.done [#allocation7], 64
    $region17: #{tpu_custom_call.1} parent=1 // pred_fallthru
      _
    %p41 = scmp.eq.s32.totalorder 0, 0
    // Predicated region
    $region18: #{tpu_custom_call.1} parent=1 // pred_check
      %p42 = pneg %p41
    $region19: #{tpu_custom_call.1} parent=1 // pred_check_branch
      %44 = sbr.rel (%p42) target = $region21
    $region20: #{tpu_custom_call.1} parent=1 // pred_region
      %v45 = vlaneseq
      %vm46 = vcmp.ge.s32.totalorder %v45, 0
      %vm47 = vcmp.lt.s32.totalorder %v45, 256
      %vm48 = vmand %vm46, %vm47
      %49 = vst.msk [vmem:[#allocation2] sm:$0x3] %vm48, 0.0
      %50 = vst.msk [vmem:[#allocation2 + $0x2] sm:$0x3] %vm48, 0.0
      %51 = vst.msk [vmem:[#allocation3] sm:$0x3] %vm48, 0.0
      %52 = vst.msk [vmem:[#allocation3 + $0x2] sm:$0x3] %vm48, 0.0
    $region21: #{tpu_custom_call.1} parent=1 // pred_fallthru
      _
    %v53 = vld [vmem:[#allocation4] sm:$0xff]
    %v54 = vld [vmem:[#allocation4 + $0x8] sm:$0xff]
    %v55 = vld [vmem:[#allocation6] sm:$0x3]
    %v56 = vld [vmem:[#allocation6 + $0x2] sm:$0x3]
    %v59 = vcombine.high %v53, %v53
    %v60 = vcombine.high %v54, %v54
    %vm63 = vcmask 1043456
    %v64 = vsel %vm63, %v53, -inf
    %v65 = vrot.slane %v64, 4
    %v66 = vmax.f32 %v64, %v65
    %v67 = vrot.slane %v66, 2
    %v68 = vmax.f32 %v66, %v67
    %v69 = vrot.slane %v68, 1
    %v70 = vmax.f32 %v68, %v69
    %v71 = vsel %vm63, %v59, -inf
    %v72 = vrot.slane %v71, 4
    %v73 = vmax.f32 %v71, %v72
    %v74 = vrot.slane %v73, 2
    %v75 = vmax.f32 %v73, %v74
    %v76 = vrot.slane %v75, 1
    %v77 = vmax.f32 %v75, %v76
    %v78 = vsel %vm63, %v54, -inf
    %v79 = vrot.slane %v78, 4
    %v80 = vmax.f32 %v78, %v79
    %v81 = vrot.slane %v80, 2
    %v82 = vmax.f32 %v80, %v81
    %v83 = vrot.slane %v82, 1
    %v84 = vmax.f32 %v82, %v83
    %v85 = vsel %vm63, %v60, -inf
    %v86 = vrot.slane %v85, 4
    %v87 = vmax.f32 %v85, %v86
    %v88 = vrot.slane %v87, 2
    %v89 = vmax.f32 %v87, %v88
    %v90 = vrot.slane %v89, 1
    %v91 = vmax.f32 %v89, %v90
    %v96 = vcombine.low %v70, %v77
    %v97 = vcombine.low %v84, %v91
    %v100 = vsub.f32 %v53, %v96
    %v101 = vsub.f32 %v54, %v97
    %v102 = vmul.f32 %v100, 1.442695
    %v103 = vpow.pop %v102
    %v104 = vmul.f32 %v101, 1.442695
    %v105 = vpow.pop %v104
    %v108 = vcombine.high %v103, %v103
    %v109 = vcombine.high %v105, %v105
    %v112 = vsel %vm63, %v103, 0.0
    %v113 = vrot.slane %v112, 4
    %v114 = vadd.f32 %v112, %v113
    %v115 = vrot.slane %v114, 2
    %v116 = vadd.f32 %v114, %v115
    %v117 = vrot.slane %v116, 1
    %v118 = vadd.f32 %v116, %v117
    %v119 = vsel %vm63, %v108, 0.0
    %v120 = vrot.slane %v119, 4
    %v121 = vadd.f32 %v119, %v120
    %v122 = vrot.slane %v121, 2
    %v123 = vadd.f32 %v121, %v122
    %v124 = vrot.slane %v123, 1
    %v125 = vadd.f32 %v123, %v124
    %v126 = vsel %vm63, %v105, 0.0
    %v127 = vrot.slane %v126, 4
    %v128 = vadd.f32 %v126, %v127
    %v129 = vrot.slane %v128, 2
    %v130 = vadd.f32 %v128, %v129
    %v131 = vrot.slane %v130, 1
    %v132 = vadd.f32 %v130, %v131
    %v133 = vsel %vm63, %v109, 0.0
    %v134 = vrot.slane %v133, 4
    %v135 = vadd.f32 %v133, %v134
    %v136 = vrot.slane %v135, 2
    %v137 = vadd.f32 %v135, %v136
    %v138 = vrot.slane %v137, 1
    %v139 = vadd.f32 %v137, %v138
    %v140 = vlog2.pop %v118
    %v141 = vmul.f32 %v140, 0.6931472
    %v142 = vlog2.pop %v125
    %v143 = vmul.f32 %v142, 0.6931472
    %v144 = vlog2.pop %v132
    %v145 = vmul.f32 %v144, 0.6931472
    %v146 = vlog2.pop %v139
    %v147 = vmul.f32 %v146, 0.6931472
    %v148 = vadd.f32 %v70, %v141
    %v149 = vadd.f32 %v77, %v143
    %v150 = vadd.f32 %v84, %v145
    %v151 = vadd.f32 %v91, %v147
    %v152 = vlaneseq
    %v153 = vshrl.u32 %v152, 7
    %v154 = vlaneseq
    %v155 = vshrl.u32 %v154, 7
    %v156 = vsub.s32 0, %v155
    %v157 = vrot.slane %v55, %v156
    %v158 = vlaneseq
    %v159 = vshrl.u32 %v158, 7
    %v160 = vsub.s32 1, %v159
    %v161 = vrot.slane %v55, %v160
    %v162 = vlaneseq
    %v163 = vshrl.u32 %v162, 7
    %v164 = vsub.s32 0, %v163
    %v165 = vrot.slane %v56, %v164
    %v166 = vlaneseq
    %v167 = vshrl.u32 %v166, 7
    %v168 = vsub.s32 1, %v167
    %v169 = vrot.slane %v56, %v168
    %vm170 = vcmp.eq.s32.totalorder %v153, %v157
    %vm171 = vcmp.eq.s32.totalorder %v153, %v161
    %vm172 = vcmp.eq.s32.totalorder %v153, %v165
    %vm173 = vcmp.eq.s32.totalorder %v153, %v169
    %v174 = vsel %vm170, %v53, 0.0
    %v175 = vsel %vm171, %v59, 0.0
    %v176 = vsel %vm172, %v54, 0.0
    %v177 = vsel %vm173, %v60, 0.0
    %v178 = vsel %vm63, %v174, 0.0
    %v179 = vrot.slane %v178, 4
    %v180 = vadd.f32 %v178, %v179
    %v181 = vrot.slane %v180, 2
    %v182 = vadd.f32 %v180, %v181
    %v183 = vrot.slane %v182, 1
    %v184 = vadd.f32 %v182, %v183
    %v185 = vsel %vm63, %v175, 0.0
    %v186 = vrot.slane %v185, 4
    %v187 = vadd.f32 %v185, %v186
    %v188 = vrot.slane %v187, 2
    %v189 = vadd.f32 %v187, %v188
    %v190 = vrot.slane %v189, 1
    %v191 = vadd.f32 %v189, %v190
    %v192 = vsel %vm63, %v176, 0.0
    %v193 = vrot.slane %v192, 4
    %v194 = vadd.f32 %v192, %v193
    %v195 = vrot.slane %v194, 2
    %v196 = vadd.f32 %v194, %v195
    %v197 = vrot.slane %v196, 1
    %v198 = vadd.f32 %v196, %v197
    %v199 = vsel %vm63, %v177, 0.0
    %v200 = vrot.slane %v199, 4
    %v201 = vadd.f32 %v199, %v200
    %v202 = vrot.slane %v201, 2
    %v203 = vadd.f32 %v201, %v202
    %v204 = vrot.slane %v203, 1
    %v205 = vadd.f32 %v203, %v204
    %vm206 = vcmp.ne.s32.totalorder %v55, 4294967295
    %vm207 = vcmp.ne.s32.totalorder %v56, 4294967295
    %v208 = vsub.f32 %v148, %v184
    %v209 = vsub.f32 %v149, %v191
    %v210 = vsub.f32 %v150, %v198
    %v211 = vsub.f32 %v151, %v205
    %v216 = vcombine.low %v208, %v209
    %v218 = vunpack.c.l.s4 1966171168
    %v219 = vunpack.c.0.s8 %v218
    %v220 = vlaneseq
    %v221 = vshrl.u32 %v220, 7
    %v222 = vsub.s32 %v219, %v221
    %v223 = vrot.slane %v216, %v222
    %v225 = vunpack.c.l.s4 1966171168
    %v226 = vunpack.c.0.s8 %v225
    %v227 = vlaneseq
    %v228 = vshrl.u32 %v227, 7
    %v229 = vsub.s32 %v226, %v228
    %v230 = vrot.slane %v223, %v229
    %v231 = vcombine.low %v210, %v211
    %v233 = vunpack.c.l.s4 1966171168
    %v234 = vunpack.c.0.s8 %v233
    %v235 = vlaneseq
    %v236 = vshrl.u32 %v235, 7
    %v237 = vsub.s32 %v234, %v236
    %v238 = vrot.slane %v231, %v237
    %v240 = vunpack.c.l.s4 1966171168
    %v241 = vunpack.c.0.s8 %v240
    %v242 = vlaneseq
    %v243 = vshrl.u32 %v242, 7
    %v244 = vsub.s32 %v241, %v243
    %v245 = vrot.slane %v238, %v244
    %v248 = vsel %vm206, %v230, 0.0
    %v249 = vsel %vm207, %v245, 0.0
    %v250 = vsel %vm206, 1, 0
    %v251 = vsel %vm207, 1, 0
    %v252 = vcvt.s32.f32 %v250
    %v253 = vcvt.s32.f32 %v251
    %v254 = vld [vmem:[#allocation2] sm:$0x3]
    %v255 = vld [vmem:[#allocation2 + $0x2] sm:$0x3]
    %v256 = vadd.f32 %v254, %v248
    %v257 = vadd.f32 %v255, %v249
    %v258 = vlaneseq
    %vm259 = vcmp.ge.s32.totalorder %v258, 0
    %vm260 = vcmp.lt.s32.totalorder %v258, 256
    %vm261 = vmand %vm259, %vm260
    %262 = vst.msk [vmem:[#allocation2] sm:$0x3] %vm261, %v256
    %263 = vst.msk [vmem:[#allocation2 + $0x2] sm:$0x3] %vm261, %v257
    %v264 = vld [vmem:[#allocation3] sm:$0x3]
    %v265 = vld [vmem:[#allocation3 + $0x2] sm:$0x3]
    %v266 = vadd.f32 %v264, %v252
    %v267 = vadd.f32 %v265, %v253
    %268 = vst.msk [vmem:[#allocation3] sm:$0x3] %vm261, %v266
    %269 = vst.msk [vmem:[#allocation3 + $0x2] sm:$0x3] %vm261, %v267
    // Predicated region
    $region22: #{tpu_custom_call.1} parent=1 // pred_check
      %p270 = pneg %p41
    $region23: #{tpu_custom_call.1} parent=1 // pred_check_branch
      %272 = sbr.rel (%p270) target = $region25
    $region24: #{tpu_custom_call.1} parent=1 // pred_region
      %v273 = vld [vmem:[#allocation2] sm:$0x3]
      %v274 = vld [vmem:[#allocation2 + $0x2] sm:$0x3]
      %v277 = vlaneseq
      %v278 = vshrl.u32 %v277, 7
      %v279 = vsub.s32 0, %v278
      %v280 = vrot.slane %v273, %v279
      %v281 = vlaneseq
      %v282 = vshrl.u32 %v281, 7
      %v283 = vsub.s32 1, %v282
      %v284 = vrot.slane %v273, %v283
      %v285 = vlaneseq
      %v286 = vshrl.u32 %v285, 7
      %v287 = vsub.s32 0, %v286
      %v288 = vrot.slane %v274, %v287
      %v289 = vlaneseq
      %v290 = vshrl.u32 %v289, 7
      %v291 = vsub.s32 1, %v290
      %v292 = vrot.slane %v274, %v291
      %vm297 = vcmask 1040384
      %v298 = vsel %vm297, %v280, 0.0
      %v299 = vsel %vm297, %v284, 0.0
      %v300 = vadd.f32 %v298, %v299
      %301 = vadd.xlane.f32.xlu0 %v300
      %v302 = vpop.xlane.xlu0 %301
      %v303 = vsel %vm297, %v288, 0.0
      %v304 = vsel %vm297, %v292, 0.0
      %v305 = vadd.f32 %v303, %v304
      %306 = vadd.xlane.f32.xlu0 %v305
      %v307 = vpop.xlane.xlu0 %306
      %vm308 = vcmask 0
      %309 = vst.msk [vmem:[%s2] sm:$0x1] %vm308, %v302
      %310 = vst.msk [vmem:[%s2 + $0x1] sm:$0x1] %vm308, %v307
      %v311 = vld [vmem:[#allocation3] sm:$0x3]
      %v312 = vld [vmem:[#allocation3 + $0x2] sm:$0x3]
      %v315 = vlaneseq
      %v316 = vshrl.u32 %v315, 7
      %v317 = vsub.s32 0, %v316
      %v318 = vrot.slane %v311, %v317
      %v319 = vlaneseq
      %v320 = vshrl.u32 %v319, 7
      %v321 = vsub.s32 1, %v320
      %v322 = vrot.slane %v311, %v321
      %v323 = vlaneseq
      %v324 = vshrl.u32 %v323, 7
      %v325 = vsub.s32 0, %v324
      %v326 = vrot.slane %v312, %v325
      %v327 = vlaneseq
      %v328 = vshrl.u32 %v327, 7
      %v329 = vsub.s32 1, %v328
      %v330 = vrot.slane %v312, %v329
      %v335 = vsel %vm297, %v318, 0.0
      %v336 = vsel %vm297, %v322, 0.0
      %v337 = vadd.f32 %v335, %v336
      %338 = vadd.xlane.f32.xlu0 %v337
      %v339 = vpop.xlane.xlu0 %338
      %v340 = vsel %vm297, %v326, 0.0
      %v341 = vsel %vm297, %v330, 0.0
      %v342 = vadd.f32 %v340, %v341
      %343 = vadd.xlane.f32.xlu0 %v342
      %v344 = vpop.xlane.xlu0 %343
      %345 = vst.msk [vmem:[%s3] sm:$0x1] %vm308, %v339
      %346 = vst.msk [vmem:[%s3 + $0x1] sm:$0x1] %vm308, %v344
    $region25: #{tpu_custom_call.1} parent=1 // pred_fallthru
      _
    // Predicated region
    $region26: #{tpu_custom_call.1} parent=1 // pred_check
      _
    $region27: #{tpu_custom_call.1} parent=1 // pred_check_branch
      %348 = sbr.rel (0) target = $region29
    $region28: #{tpu_custom_call.1} parent=1 // pred_region
      _
    $region29: #{tpu_custom_call.1} parent=1 // pred_fallthru
      _
    // Predicated region
    $region30: #{tpu_custom_call.1} parent=1 // pred_check
      _
    $region31: #{tpu_custom_call.1} parent=1 // pred_check_branch
      %350 = sbr.rel (0) target = $region33
    $region32: #{tpu_custom_call.1} parent=1 // pred_region
      _
    $region33: #{tpu_custom_call.1} parent=1 // pred_fallthru
      _
    // Predicated region
    $region34: #{tpu_custom_call.1} parent=1 // pred_check
      _
    $region35: #{tpu_custom_call.1} parent=1 // pred_check_branch
      %352 = sbr.rel (0) target = $region37
    $region36: #{tpu_custom_call.1} parent=1 // pred_region
      _
    $region37: #{tpu_custom_call.1} parent=1 // pred_fallthru
      _
    // Predicated region
    $region38: #{tpu_custom_call.1} parent=1 // pred_check
      _
    $region39: #{tpu_custom_call.1} parent=1 // pred_check_branch
      %354 = sbr.rel (0) target = $region41
    $region40: #{tpu_custom_call.1} parent=1 // pred_region
      _
    $region41: #{tpu_custom_call.1} parent=1 // pred_fallthru
      _
    %355 = vsyncpa [#allocation5], 1
    %356 = vsyncpa [#allocation7], 1

</llo_original>
